<compile_context>
chip_gen: v6e
topology: v6e:2x2x1
jax: 0.10.0
libtpu: 0.0.40
codegen_flags: <defaults>
</compile_context>

<pallas_src>
import jax
import jax.numpy as jnp
from jax.experimental import pallas as pl
from jax.experimental.pallas import tpu as pltpu

block_size = 32   # max sequence length (tril buffer size in the torch module)
n_embd = 128
dropout_p = 0.2   # eval-mode identity in this kernel


def head_kernel(x_ref, wqkv_ref, o_ref):
    # x_ref:    (Bt, T, C)  f32 activation tile (Bt batch elements per step)
    # wqkv_ref: (C, 3H)     f32 fused [Wq | Wk | Wv] (already transposed)
    # o_ref:    (Bt, T, H)  f32
    Bt, T, C = x_ref.shape
    H = wqkv_ref.shape[1] // 3
    scale = float(C) ** 0.5   # matches torch: masked_fill(-inf) * C**0.5

    # --- fused QKV projection: one big MXU push in bf16, f32 accumulation ---
    x2d = x_ref[...].reshape(Bt * T, C).astype(jnp.bfloat16)
    w = wqkv_ref[...].astype(jnp.bfloat16)
    qkv = jnp.dot(x2d, w, preferred_element_type=jnp.float32)        # (Bt*T, 3H)

    # Fold the C**0.5 scale into q (masked entries stay -inf either way).
    q = (qkv[:, :H] * scale).reshape(Bt, T, H).astype(jnp.bfloat16)
    k = qkv[:, H:2 * H].reshape(Bt, T, H).astype(jnp.bfloat16)
    v = qkv[:, 2 * H:].reshape(Bt, T, H).astype(jnp.bfloat16)

    # --- scores: contract H directly (no explicit transpose), f32 acc ---
    s = jnp.einsum("bth,bsh->bts", q, k,
                   preferred_element_type=jnp.float32)               # (Bt, T, T)

    # Causal (tril) mask.
    row = jax.lax.broadcasted_iota(jnp.int32, (T, T), 0)
    col = jax.lax.broadcasted_iota(jnp.int32, (T, T), 1)
    causal = row >= col
    wei = jnp.where(causal[None], s, -jnp.inf)

    # Softmax in f32 (diagonal always unmasked -> finite row max, no NaN).
    wei = wei - jnp.max(wei, axis=-1, keepdims=True)
    p = jnp.exp(wei)
    p = p * pl.reciprocal(jnp.sum(p, axis=-1, keepdims=True), approx=True)

    # TODO(synk): training-mode dropout (p=0.2) on `p` is not implemented
    # (eval-mode identity).

    out = jnp.einsum("bts,bsh->bth", p.astype(jnp.bfloat16), v,
                     preferred_element_type=jnp.float32)             # (Bt, T, H)
    o_ref[...] = out.astype(o_ref.dtype)


def head_forward(x, w_qkv, *, batch_block=32):
    """x: (B, T, C) f32; w_qkv: (C, 3H) f32 = concat of transposed q/k/v weights."""
    B, T, C = x.shape
    H = w_qkv.shape[1] // 3

    Bt = min(B, batch_block)
    n_steps = pl.cdiv(B, Bt)
    Bp = n_steps * Bt
    if Bp != B:
        # Pad batch to a multiple of the batch block; padded rows are discarded.
        x = jnp.pad(x, ((0, Bp - B), (0, 0), (0, 0)))

    out = pl.pallas_call(
        head_kernel,
        out_shape=jax.ShapeDtypeStruct((Bp, T, H), jnp.float32),
        grid_spec=pltpu.PrefetchScalarGridSpec(
            num_scalar_prefetch=0,
            grid=(n_steps,),
            in_specs=[
                pl.BlockSpec((Bt, T, C), lambda b: (b, 0, 0)),
                pl.BlockSpec((C, 3 * H), lambda b: (0, 0)),
            ],
            out_specs=pl.BlockSpec((Bt, T, H), lambda b: (b, 0, 0)),
        ),
        compiler_params=pltpu.CompilerParams(
            dimension_semantics=("parallel",)),
    )(x, w_qkv)
    return out[:B]


# ----------------------------- references ---------------------------------

def head_reference_f32(x, w_qkv):
    """Pure-JAX f32 reference of the torch forward (eval mode), exact op order."""
    B, T, C = x.shape
    H = w_qkv.shape[1] // 3
    q = x @ w_qkv[:, :H]
    k = x @ w_qkv[:, H:2 * H]
    v = x @ w_qkv[:, 2 * H:]
    wei = jnp.einsum("bth,bsh->bts", q, k)
    tril = jnp.tril(jnp.ones((T, T), dtype=bool))
    wei = jnp.where(tril[None], wei, -jnp.inf) * (float(C) ** 0.5)
    wei = jax.nn.softmax(wei, axis=-1)
    return jnp.einsum("bts,bsh->bth", wei, v)


def head_reference_bf16(x, w_qkv):
    """Reference mirroring the kernel numerics (bf16 matmul inputs, f32 acc)."""
    B, T, C = x.shape
    H = w_qkv.shape[1] // 3
    scale = float(C) ** 0.5
    xb = x.astype(jnp.bfloat16).reshape(B * T, C)
    wb = w_qkv.astype(jnp.bfloat16)
    qkv = jnp.dot(xb, wb, preferred_element_type=jnp.float32)
    q = (qkv[:, :H] * scale).reshape(B, T, H).astype(jnp.bfloat16)
    k = qkv[:, H:2 * H].reshape(B, T, H).astype(jnp.bfloat16)
    v = qkv[:, 2 * H:].reshape(B, T, H).astype(jnp.bfloat16)
    s = jnp.einsum("bth,bsh->bts", q, k, preferred_element_type=jnp.float32)
    tril = jnp.tril(jnp.ones((T, T), dtype=bool))
    wei = jnp.where(tril[None], s, -jnp.inf)
    wei = wei - jnp.max(wei, axis=-1, keepdims=True)
    p = jnp.exp(wei)
    p = p / jnp.sum(p, axis=-1, keepdims=True)
    return jnp.einsum("bts,bsh->bth", p.astype(jnp.bfloat16), v,
                      preferred_element_type=jnp.float32)


if __name__ == "__main__":
    B, T, C, H = 2, 8, n_embd, 64   # T <= block_size, C == n_embd
    key = jax.random.PRNGKey(0)
    kx, kq, kk, kv = jax.random.split(key, 4)

    x = jax.random.normal(kx, (B, T, C), dtype=jnp.float32)
    # torch Linear weight shape is (head_size, n_embd); init deterministically
    wq = jax.random.normal(kq, (H, C), dtype=jnp.float32) * 0.02
    wk = jax.random.normal(kk, (H, C), dtype=jnp.float32) * 0.02
    wv = jax.random.normal(kv, (H, C), dtype=jnp.float32) * 0.02

    # Fuse: pre-transpose to (C, H) each and concat -> (C, 3H)
    w_qkv = jnp.concatenate([wq.T, wk.T, wv.T], axis=1)

    out = head_forward(x, w_qkv)
    jax.block_until_ready(out)
    assert out.shape == (B, T, H)

    # Primary correctness check: same math as the kernel (bf16 matmuls, f32 acc).
    ref_bf16 = head_reference_bf16(x, w_qkv)
    assert jnp.allclose(out, ref_bf16, atol=1e-2, rtol=1e-2), \
        "mismatch vs bf16-matched reference"

    # Fidelity check vs pure-f32 torch semantics (loose tolerance: bf16 matmuls).
    ref_f32 = head_reference_f32(x, w_qkv)
    assert jnp.allclose(out, ref_f32, atol=5e-2, rtol=5e-2), \
        "mismatch vs f32 reference"

    print("KERNEL_OK")
</pallas_src>

<mosaic_0001>
module attributes {stable_mosaic.version = 11 : i64} {
  func.func @head_kernel(%arg0: i32, %arg1: memref<2x8x128xf32, #tpu.memory_space<vmem>>, %arg2: memref<128x192xf32, #tpu.memory_space<vmem>>, %arg3: memref<2x8x64xf32, #tpu.memory_space<vmem>>) attributes {dimension_semantics = [#tpu.dimension_semantics<parallel>], iteration_bounds = array<i64: 1>, scalar_prefetch = 0 : i64, scratch_operands = 0 : i64, tpu.core_type = #tpu.core_type<tc>, window_params = [{transform_indices = @transform_0, window_bounds = array<i64: 2, 8, 128>}, {pipeline_mode = #tpu.pipeline_mode<synchronous>, transform_indices = @transform_1, window_bounds = array<i64: 128, 192>}, {transform_indices = @transform_2, window_bounds = array<i64: 2, 8, 64>}]} {
    %c0 = arith.constant 0 : index
    %c0_0 = arith.constant 0 : index
    %c0_1 = arith.constant 0 : index
    %0 = vector.load %arg1[%c0, %c0_0, %c0_1] : memref<2x8x128xf32, #tpu.memory_space<vmem>>, vector<2x8x128xf32>
    %1 = vector.shape_cast %0 : vector<2x8x128xf32> to vector<16x128xf32>
    %2 = arith.truncf %1 : vector<16x128xf32> to vector<16x128xbf16>
    %c0_2 = arith.constant 0 : index
    %c0_3 = arith.constant 0 : index
    %3 = vector.load %arg2[%c0_2, %c0_3] : memref<128x192xf32, #tpu.memory_space<vmem>>, vector<128x192xf32>
    %4 = arith.truncf %3 : vector<128x192xf32> to vector<128x192xbf16>
    %cst = arith.constant dense<0.000000e+00> : vector<16x192xf32>
    %5 = tpu.matmul %2, %4, %cst {dimension_numbers = #tpu.dot_dimension_numbers<[1], [0], [0], [1], [0, 0, 1, 1], [], []>} : vector<16x128xbf16>, vector<128x192xbf16>, vector<16x192xf32> -> vector<16x192xf32>
    %6 = vector.extract_strided_slice %5 {offsets = [0, 0], sizes = [16, 64], strides = [1, 1]} : vector<16x192xf32> to vector<16x64xf32>
    %cst_4 = arith.constant 11.3137083 : f32
    %7 = vector.broadcast %cst_4 : f32 to vector<16x64xf32>
    %8 = arith.mulf %6, %7 : vector<16x64xf32>
    %9 = vector.shape_cast %8 : vector<16x64xf32> to vector<2x8x64xf32>
    %10 = arith.truncf %9 : vector<2x8x64xf32> to vector<2x8x64xbf16>
    %11 = vector.extract_strided_slice %5 {offsets = [0, 64], sizes = [16, 64], strides = [1, 1]} : vector<16x192xf32> to vector<16x64xf32>
    %12 = vector.shape_cast %11 : vector<16x64xf32> to vector<2x8x64xf32>
    %13 = arith.truncf %12 : vector<2x8x64xf32> to vector<2x8x64xbf16>
    %14 = vector.extract_strided_slice %5 {offsets = [0, 128], sizes = [16, 64], strides = [1, 1]} : vector<16x192xf32> to vector<16x64xf32>
    %15 = vector.shape_cast %14 : vector<16x64xf32> to vector<2x8x64xf32>
    %16 = arith.truncf %15 : vector<2x8x64xf32> to vector<2x8x64xbf16>
    "tpu.trace_start"() <{level = 10 : i32, message = "bth,bsh->bts"}> : () -> ()
    %cst_5 = arith.constant dense<0.000000e+00> : vector<2x8x8xf32>
    %17 = tpu.matmul %10, %13, %cst_5 {dimension_numbers = #tpu.dot_dimension_numbers<[2], [2], [1], [1], [0, 0, 0, 1, 1, 1], [0], [0]>} : vector<2x8x64xbf16>, vector<2x8x64xbf16>, vector<2x8x8xf32> -> vector<2x8x8xf32>
    "tpu.trace_stop"() : () -> ()
    %18 = tpu.iota {dimensions = array<i32: 0>} : vector<8x8xi32>
    %19 = tpu.iota {dimensions = array<i32: 1>} : vector<8x8xi32>
    %20 = arith.cmpi sge, %18, %19 : vector<8x8xi32>
    %21 = vector.shape_cast %20 : vector<8x8xi1> to vector<1x8x8xi1>
    %cst_6 = arith.constant 0xFF800000 : f32
    %22 = vector.shape_cast %21 : vector<1x8x8xi1> to vector<1x8x8xi1>
    %23 = vector.broadcast %22 : vector<1x8x8xi1> to vector<2x8x8xi1>
    %24 = vector.broadcast %cst_6 : f32 to vector<2x8x8xf32>
    %25 = arith.select %23, %17, %24 : vector<2x8x8xi1>, vector<2x8x8xf32>
    %cst_7 = arith.constant dense<0xFF800000> : vector<2x8xf32>
    %26 = vector.multi_reduction <maximumf>, %25, %cst_7 [2] : vector<2x8x8xf32> to vector<2x8xf32>
    %27 = vector.shape_cast %26 : vector<2x8xf32> to vector<2x8x1xf32>
    %28 = vector.broadcast %27 : vector<2x8x1xf32> to vector<2x8x8xf32>
    %29 = arith.subf %25, %28 : vector<2x8x8xf32>
    %30 = math.exp %29 : vector<2x8x8xf32>
    %cst_8 = arith.constant dense<0.000000e+00> : vector<2x8xf32>
    %31 = vector.multi_reduction <add>, %30, %cst_8 [2] : vector<2x8x8xf32> to vector<2x8xf32>
    %32 = vector.shape_cast %31 : vector<2x8xf32> to vector<2x8x1xf32>
    %33 = tpu.reciprocal %32 {approx = true} : vector<2x8x1xf32> -> vector<2x8x1xf32>
    %34 = vector.broadcast %33 : vector<2x8x1xf32> to vector<2x8x8xf32>
    %35 = arith.mulf %30, %34 : vector<2x8x8xf32>
    %36 = arith.truncf %35 : vector<2x8x8xf32> to vector<2x8x8xbf16>
    "tpu.trace_start"() <{level = 10 : i32, message = "bts,bsh->bth"}> : () -> ()
    %cst_9 = arith.constant dense<0.000000e+00> : vector<2x8x64xf32>
    %37 = tpu.matmul %36, %16, %cst_9 {dimension_numbers = #tpu.dot_dimension_numbers<[2], [1], [1], [2], [0, 0, 0, 1, 1, 2], [0], [0]>} : vector<2x8x8xbf16>, vector<2x8x64xbf16>, vector<2x8x64xf32> -> vector<2x8x64xf32>
    "tpu.trace_stop"() : () -> ()
    %c0_10 = arith.constant 0 : index
    %c0_11 = arith.constant 0 : index
    %c0_12 = arith.constant 0 : index
    %38 = vector.load %arg3[%c0_10, %c0_11, %c0_12] : memref<2x8x64xf32, #tpu.memory_space<vmem>>, vector<2x8x64xf32>
    tpu.vector_store %arg3[%c0_10, %c0_11, %c0_12], %37 {strides = array<i32>} : memref<2x8x64xf32, #tpu.memory_space<vmem>>, vector<2x8x64xf32>,
    return
  }
  func.func @transform_0(%arg0: i32) -> (i32, i32, i32) {
    %c0_i32 = arith.constant 0 : i32
    %c0_i32_0 = arith.constant 0 : i32
    %c0_i32_1 = arith.constant 0 : i32
    return %arg0, %c0_i32, %c0_i32_0 : i32, i32, i32
  }
  func.func @transform_1(%arg0: i32) -> (i32, i32) {
    %c0_i32 = arith.constant 0 : i32
    %c0_i32_0 = arith.constant 0 : i32
    %c0_i32_1 = arith.constant 0 : i32
    return %c0_i32, %c0_i32_0 : i32, i32
  }
  func.func @transform_2(%arg0: i32) -> (i32, i32, i32) {
    %c0_i32 = arith.constant 0 : i32
    %c0_i32_0 = arith.constant 0 : i32
    %c0_i32_1 = arith.constant 0 : i32
    return %arg0, %c0_i32, %c0_i32_0 : i32, i32, i32
  }
}

</mosaic_0001>

<llo_original>
// kernel: tpu_custom_call.1
$region0: #{tpu_custom_call.1}
  #allocation0 [shape = 'u32[]', space=smem, size = 0x4, offset = 0x4, fixed_abs, tag = 'smem constant byte address 0x4 - core index']
  #allocation1 [shape = 'u32[144,128]{1,0:T(1,128)}', space=vmem, size = 0x12000, scoped, tag = 'internal scratch']
  %s0 = inlined_call_operand.vmem [shape: f32[2,8,128], index: 0, kind: input, shape index: {}]
  %s1 = inlined_call_operand.vmem [shape: f32[128,192], index: 1, kind: input, shape index: {}]
  %s2 = inlined_call_operand.hbm [shape: f32[2,8,64], index: 2, kind: output, shape index: {}]
  %s3 = sld [smem:[#allocation0]]
  $region18: #{tpu_custom_call.1} parent=0
    _
  %s5 = ssub.s32 1, %s3
  %s6 = scalar_select 0, %s5, %s3
  $region1: #{tpu_custom_call.1} parent=0
    #allocation2 [shape = 'u8[8192]{0}', space=vmem, size = 0x2000, scoped, tag = 'output window, operand 0, single buffered']
    #allocation3 [shape = 's32[1]{0}', space=sflag, size = 0x4, scoped, tag = 'scoped memory for tpu_custom_call.1']
    %7 = vsyncpa [#allocation3], 0
    // Predicated region
    $region2: #{tpu_custom_call.1} parent=1 // pred_check
      _
    $region3: #{tpu_custom_call.1} parent=1 // pred_check_branch
      %9 = sbr.rel (0) target = $region5
    $region4: #{tpu_custom_call.1} parent=1 // pred_region
      _
    $region5: #{tpu_custom_call.1} parent=1 // pred_fallthru
      _
    // Predicated region
    $region6: #{tpu_custom_call.1} parent=1 // pred_check
      _
    $region7: #{tpu_custom_call.1} parent=1 // pred_check_branch
      %11 = sbr.rel (0) target = $region9
    $region8: #{tpu_custom_call.1} parent=1 // pred_region
      _
    $region9: #{tpu_custom_call.1} parent=1 // pred_fallthru
      _
    %v13 = vld [vmem:[%s0] sm:$0xff]
    %v14 = vld [vmem:[%s0 + $0x8] sm:$0xff]
    %v15 = vpack.c.bf16 %v14, %v13
    %v16 = vld [vmem:[%s1] sm:$0xff]
    %v17 = vld [vmem:[%s1 + $0x8] sm:$0xff]
    %v18 = vld [vmem:[%s1 + $0x10] sm:$0xff]
    %v19 = vld [vmem:[%s1 + $0x18] sm:$0xff]
    %v20 = vld [vmem:[%s1 + $0x20] sm:$0xff]
    %v21 = vld [vmem:[%s1 + $0x28] sm:$0xff]
    %v22 = vld [vmem:[%s1 + $0x30] sm:$0xff]
    %v23 = vld [vmem:[%s1 + $0x38] sm:$0xff]
    %v24 = vld [vmem:[%s1 + $0x40] sm:$0xff]
    %v25 = vld [vmem:[%s1 + $0x48] sm:$0xff]
    %v26 = vld [vmem:[%s1 + $0x50] sm:$0xff]
    %v27 = vld [vmem:[%s1 + $0x58] sm:$0xff]
    %v28 = vld [vmem:[%s1 + $0x60] sm:$0xff]
    %v29 = vld [vmem:[%s1 + $0x68] sm:$0xff]
    %v30 = vld [vmem:[%s1 + $0x70] sm:$0xff]
    %v31 = vld [vmem:[%s1 + $0x78] sm:$0xff]
    %v32 = vld [vmem:[%s1 + $0x80] sm:$0xff]
    %v33 = vld [vmem:[%s1 + $0x88] sm:$0xff]
    %v34 = vld [vmem:[%s1 + $0x90] sm:$0xff]
    %v35 = vld [vmem:[%s1 + $0x98] sm:$0xff]
    %v36 = vld [vmem:[%s1 + $0xa0] sm:$0xff]
    %v37 = vld [vmem:[%s1 + $0xa8] sm:$0xff]
    %v38 = vld [vmem:[%s1 + $0xb0] sm:$0xff]
    %v39 = vld [vmem:[%s1 + $0xb8] sm:$0xff]
    %v40 = vld [vmem:[%s1 + $0xc0] sm:$0xff]
    %v41 = vld [vmem:[%s1 + $0xc8] sm:$0xff]
    %v42 = vld [vmem:[%s1 + $0xd0] sm:$0xff]
    %v43 = vld [vmem:[%s1 + $0xd8] sm:$0xff]
    %v44 = vld [vmem:[%s1 + $0xe0] sm:$0xff]
    %v45 = vld [vmem:[%s1 + $0xe8] sm:$0xff]
    %v46 = vld [vmem:[%s1 + $0xf0] sm:$0xff]
    %v47 = vld [vmem:[%s1 + $0xf8] sm:$0xff]
    %v48 = vpack.c.bf16 %v18, %v16
    %v49 = vpack.c.bf16 %v19, %v17
    %v50 = vpack.c.bf16 %v22, %v20
    %v51 = vpack.c.bf16 %v23, %v21
    %v52 = vpack.c.bf16 %v26, %v24
    %v53 = vpack.c.bf16 %v27, %v25
    %v54 = vpack.c.bf16 %v30, %v28
    %v55 = vpack.c.bf16 %v31, %v29
    %v56 = vpack.c.bf16 %v34, %v32
    %v57 = vpack.c.bf16 %v35, %v33
    %v58 = vpack.c.bf16 %v38, %v36
    %v59 = vpack.c.bf16 %v39, %v37
    %v60 = vpack.c.bf16 %v42, %v40
    %v61 = vpack.c.bf16 %v43, %v41
    %v62 = vpack.c.bf16 %v46, %v44
    %v63 = vpack.c.bf16 %v47, %v45
    %64 = vmatprep.subr.bf16.mxu0 %v63
    %65 = vmatpush1.bf16.msra.mxu0 %v62
    %66 = vmatprep.subr.bf16.mxu0 %v61
    %67 = vmatpush1.bf16.msra.mxu0 %v60
    %68 = vmatprep.subr.bf16.mxu0 %v59
    %69 = vmatpush1.bf16.msra.mxu0 %v58
    %70 = vmatprep.subr.bf16.mxu0 %v57
    %71 = vmatpush1.bf16.msra.mxu0 %v56
    %72 = vmatprep.subr.bf16.mxu0 %v55
    %73 = vmatpush1.bf16.msra.mxu0 %v54
    %74 = vmatprep.subr.bf16.mxu0 %v53
    %75 = vmatpush1.bf16.msra.mxu0 %v52
    %76 = vmatprep.subr.bf16.mxu0 %v51
    %77 = vmatpush1.bf16.msra.mxu0 %v50
    %78 = vmatprep.subr.bf16.mxu0 %v49
    %79 = vmatpush1.bf16.msra.mxu0 %v48
    %80 = vmatprep.subr.bf16.mxu0 0
    %81 = vmatpush2.bf16.msra.mxu0 0
    %82 = vmatprep.subr.bf16.mxu0 0
    %83 = vmatpush2.bf16.msra.mxu0 0
    %84 = vmatprep.subr.bf16.mxu0 0
    %85 = vmatpush2.bf16.msra.mxu0 0
    %86 = vmatprep.subr.bf16.mxu0 0
    %87 = vmatpush2.bf16.msra.mxu0 0
    %88 = vmatprep.subr.bf16.mxu0 0
    %89 = vmatpush2.bf16.msra.mxu0 0
    %90 = vmatprep.subr.bf16.mxu0 0
    %91 = vmatpush2.bf16.msra.mxu0 0
    %92 = vmatprep.subr.bf16.mxu0 0
    %93 = vmatpush2.bf16.msra.mxu0 0
    %94 = vmatprep.subr.bf16.mxu0 0
    %95 = vmatpush2.bf16.msra.mxu0 0
    %96 = vmatprep.mubr.bf16.mxu0 0
    %97 = vmatmul.mubr.bf16.gmra.mxu0 %v15
    %v98 = vpop.f32.mrf.mxu0
    %v99 = vadd.f32 0.0, %v98
    %v100 = vpop.f32.mrf.mxu0
    %v101 = vadd.f32 0.0, %v100
    %v102 = vpop.f32.mrf.mxu0
    %v103 = vadd.f32 0.0, %v102
    %v104 = vpop.f32.mrf.mxu0
    %v105 = vadd.f32 0.0, %v104
    %106 = vdwg.mxu0
    %v107 = vmul.f32 %v99, 11.313708
    %v108 = vmul.f32 %v103, 11.313708
    %v109 = vpack.c.bf16 %v107, %v107
    %v110 = vpack.c.bf16 %v108, %v108
    %v111 = vpack.c.bf16 %v99, %v99
    %v112 = vpack.c.bf16 %v103, %v103
    %v113 = vpack.c.bf16 %v101, %v101
    %v114 = vpack.c.bf16 %v105, %v105
    %116 = vrot.lane.b32.xlu0 %v111, 64
    %v117 = vpop.permute.xlu0 %116
    %vm118 = vcmask 523264
    %v120 = vsel %vm118, %v109, 0
    %v123 = vsel %vm118, %v117, 0
    %125 = vmatprep.subr.bf16.mxu0 0
    %126 = vmatpush1.bf16.xpose.msra.mxu0 0
    %127 = vmatprep.subr.bf16.mxu0 0
    %128 = vmatpush1.bf16.xpose.msra.mxu0 0
    %129 = vmatprep.subr.bf16.mxu0 0
    %130 = vmatpush1.bf16.xpose.msra.mxu0 0
    %131 = vmatprep.subr.bf16.mxu0 0
    %132 = vmatpush1.bf16.xpose.msra.mxu0 0
    %133 = vmatprep.subr.bf16.mxu0 0
    %134 = vmatpush1.bf16.xpose.msra.mxu0 0
    %135 = vmatprep.subr.bf16.mxu0 0
    %136 = vmatpush1.bf16.xpose.msra.mxu0 0
    %137 = vmatprep.subr.bf16.mxu0 0
    %138 = vmatpush1.bf16.xpose.msra.mxu0 0
    %139 = vmatprep.subr.bf16.mxu0 0
    %140 = vmatpush1.bf16.xpose.msra.mxu0 %v123
    %141 = vmatprep.subr.bf16.mxu0 0
    %142 = vmatpush2.bf16.xpose.msra.mxu0 0
    %143 = vmatprep.subr.bf16.mxu0 0
    %144 = vmatpush2.bf16.xpose.msra.mxu0 0
    %145 = vmatprep.subr.bf16.mxu0 0
    %146 = vmatpush2.bf16.xpose.msra.mxu0 0
    %147 = vmatprep.subr.bf16.mxu0 0
    %148 = vmatpush2.bf16.xpose.msra.mxu0 0
    %149 = vmatprep.subr.bf16.mxu0 0
    %150 = vmatpush2.bf16.xpose.msra.mxu0 0
    %151 = vmatprep.subr.bf16.mxu0 0
    %152 = vmatpush2.bf16.xpose.msra.mxu0 0
    %153 = vmatprep.subr.bf16.mxu0 0
    %154 = vmatpush2.bf16.xpose.msra.mxu0 0
    %155 = vmatprep.subr.bf16.mxu0 0
    %156 = vmatpush2.bf16.xpose.msra.mxu0 0
    %157 = vmatprep.mubr.bf16.mxu0 0
    %158 = vmatmul.mubr.bf16.gmra.mxu0 %v120
    %v159 = vpop.f32.mrf.mxu0
    %v160 = vadd.f32 0.0, %v159
    %v161 = vpop.f32.mrf.mxu0
    %v162 = vpop.f32.mrf.mxu0
    %v163 = vpop.f32.mrf.mxu0
    %164 = vdwg.mxu0
    %166 = vrot.lane.b32.xlu0 %v112, 64
    %v167 = vpop.permute.xlu0 %166
    %v169 = vsel %vm118, %v110, 0
    %v172 = vsel %vm118, %v167, 0
    %174 = vmatprep.subr.bf16.mxu0 0
    %175 = vmatpush1.bf16.xpose.msra.mxu0 0
    %176 = vmatprep.subr.bf16.mxu0 0
    %177 = vmatpush1.bf16.xpose.msra.mxu0 0
    %178 = vmatprep.subr.bf16.mxu0 0
    %179 = vmatpush1.bf16.xpose.msra.mxu0 0
    %180 = vmatprep.subr.bf16.mxu0 0
    %181 = vmatpush1.bf16.xpose.msra.mxu0 0
    %182 = vmatprep.subr.bf16.mxu0 0
    %183 = vmatpush1.bf16.xpose.msra.mxu0 0
    %184 = vmatprep.subr.bf16.mxu0 0
    %185 = vmatpush1.bf16.xpose.msra.mxu0 0
    %186 = vmatprep.subr.bf16.mxu0 0
    %187 = vmatpush1.bf16.xpose.msra.mxu0 0
    %188 = vmatprep.subr.bf16.mxu0 0
    %189 = vmatpush1.bf16.xpose.msra.mxu0 %v172
    %190 = vmatprep.subr.bf16.mxu0 0
    %191 = vmatpush2.bf16.xpose.msra.mxu0 0
    %192 = vmatprep.subr.bf16.mxu0 0
    %193 = vmatpush2.bf16.xpose.msra.mxu0 0
    %194 = vmatprep.subr.bf16.mxu0 0
    %195 = vmatpush2.bf16.xpose.msra.mxu0 0
    %196 = vmatprep.subr.bf16.mxu0 0
    %197 = vmatpush2.bf16.xpose.msra.mxu0 0
    %198 = vmatprep.subr.bf16.mxu0 0
    %199 = vmatpush2.bf16.xpose.msra.mxu0 0
    %200 = vmatprep.subr.bf16.mxu0 0
    %201 = vmatpush2.bf16.xpose.msra.mxu0 0
    %202 = vmatprep.subr.bf16.mxu0 0
    %203 = vmatpush2.bf16.xpose.msra.mxu0 0
    %204 = vmatprep.subr.bf16.mxu0 0
    %205 = vmatpush2.bf16.xpose.msra.mxu0 0
    %206 = vmatprep.mubr.bf16.mxu0 0
    %207 = vmatmul.mubr.bf16.gmra.mxu0 %v169
    %v208 = vpop.f32.mrf.mxu0
    %v209 = vadd.f32 0.0, %v208
    %v210 = vpop.f32.mrf.mxu0
    %v211 = vpop.f32.mrf.mxu0
    %v212 = vpop.f32.mrf.mxu0
    %213 = vdwg.mxu0
    %v214 = vlaneseq
    %v215 = vshrl.u32 %v214, 7
    %v216 = vlaneseq
    %v217 = vand.u32 %v216, 127
    %vm218 = vcmp.ge.s32.totalorder %v215, %v217
    %v219 = vsel %vm218, 1, 0
    %vm220 = vcmp.eq.s32.totalorder %v219, 1
    %v221 = vsel %vm220, %v160, -inf
    %v222 = vsel %vm220, %v209, -inf
    %vm223 = vcmask 64512
    %v224 = vsel %vm223, %v221, -inf
    %225 = vmax.xlane.f32.xlu0 %v224
    %v226 = vpop.xlane.xlu0 %225
    %v227 = vsel %vm223, %v222, -inf
    %228 = vmax.xlane.f32.xlu0 %v227
    %v229 = vpop.xlane.xlu0 %228
    %v230 = vsub.f32 %v221, %v226
    %v231 = vsub.f32 %v222, %v229
    %v232 = vmul.f32 %v230, 1.442695
    %v233 = vpow.pop %v232
    %v234 = vmul.f32 %v231, 1.442695
    %v235 = vpow.pop %v234
    %v236 = vsel %vm223, %v233, 0.0
    %237 = vadd.xlane.f32.xlu0 %v236
    %v238 = vpop.xlane.xlu0 %237
    %v239 = vsel %vm223, %v235, 0.0
    %240 = vadd.xlane.f32.xlu0 %v239
    %v241 = vpop.xlane.xlu0 %240
    %v242 = vrcp.pop %v238
    %v243 = vrcp.pop %v241
    %v244 = vmul.f32 %v233, %v242
    %v245 = vmul.f32 %v235, %v243
    %v246 = vpack.c.bf16 %v244, %v244
    %v247 = vpack.c.bf16 %v245, %v245
    %v249 = vsel %vm223, %v246, 0
    %vm251 = vcmask 1043456
    %v253 = vsel %vm251, %v113, 0
    %255 = vmatprep.subr.bf16.mxu0 0
    %256 = vmatpush1.bf16.msra.mxu0 0
    %257 = vmatprep.subr.bf16.mxu0 0
    %258 = vmatpush1.bf16.msra.mxu0 0
    %259 = vmatprep.subr.bf16.mxu0 0
    %260 = vmatpush1.bf16.msra.mxu0 0
    %261 = vmatprep.subr.bf16.mxu0 0
    %262 = vmatpush1.bf16.msra.mxu0 0
    %263 = vmatprep.subr.bf16.mxu0 0
    %264 = vmatpush1.bf16.msra.mxu0 0
    %265 = vmatprep.subr.bf16.mxu0 0
    %266 = vmatpush1.bf16.msra.mxu0 0
    %267 = vmatprep.subr.bf16.mxu0 0
    %268 = vmatpush1.bf16.msra.mxu0 0
    %269 = vmatprep.subr.bf16.mxu0 0
    %270 = vmatpush1.bf16.msra.mxu0 %v253
    %271 = vmatprep.subr.bf16.mxu0 0
    %272 = vmatpush2.bf16.msra.mxu0 0
    %273 = vmatprep.subr.bf16.mxu0 0
    %274 = vmatpush2.bf16.msra.mxu0 0
    %275 = vmatprep.subr.bf16.mxu0 0
    %276 = vmatpush2.bf16.msra.mxu0 0
    %277 = vmatprep.subr.bf16.mxu0 0
    %278 = vmatpush2.bf16.msra.mxu0 0
    %279 = vmatprep.subr.bf16.mxu0 0
    %280 = vmatpush2.bf16.msra.mxu0 0
    %281 = vmatprep.subr.bf16.mxu0 0
    %282 = vmatpush2.bf16.msra.mxu0 0
    %283 = vmatprep.subr.bf16.mxu0 0
    %284 = vmatpush2.bf16.msra.mxu0 0
    %285 = vmatprep.subr.bf16.mxu0 0
    %286 = vmatpush2.bf16.msra.mxu0 0
    %287 = vmatprep.mubr.bf16.mxu0 0
    %288 = vmatmul.mubr.bf16.gmra.mxu0 %v249
    %v289 = vpop.f32.mrf.mxu0
    %v290 = vadd.f32 0.0, %v289
    %v291 = vpop.f32.mrf.mxu0
    %v292 = vpop.f32.mrf.mxu0
    %v293 = vpop.f32.mrf.mxu0
    %294 = vdwg.mxu0
    %v296 = vsel %vm223, %v247, 0
    %v299 = vsel %vm251, %v114, 0
    %301 = vmatprep.subr.bf16.mxu0 0
    %302 = vmatpush1.bf16.msra.mxu0 0
    %303 = vmatprep.subr.bf16.mxu0 0
    %304 = vmatpush1.bf16.msra.mxu0 0
    %305 = vmatprep.subr.bf16.mxu0 0
    %306 = vmatpush1.bf16.msra.mxu0 0
    %307 = vmatprep.subr.bf16.mxu0 0
    %308 = vmatpush1.bf16.msra.mxu0 0
    %309 = vmatprep.subr.bf16.mxu0 0
    %310 = vmatpush1.bf16.msra.mxu0 0
    %311 = vmatprep.subr.bf16.mxu0 0
    %312 = vmatpush1.bf16.msra.mxu0 0
    %313 = vmatprep.subr.bf16.mxu0 0
    %314 = vmatpush1.bf16.msra.mxu0 0
    %315 = vmatprep.subr.bf16.mxu0 0
    %316 = vmatpush1.bf16.msra.mxu0 %v299
    %317 = vmatprep.subr.bf16.mxu0 0
    %318 = vmatpush2.bf16.msra.mxu0 0
    %319 = vmatprep.subr.bf16.mxu0 0
    %320 = vmatpush2.bf16.msra.mxu0 0
    %321 = vmatprep.subr.bf16.mxu0 0
    %322 = vmatpush2.bf16.msra.mxu0 0
    %323 = vmatprep.subr.bf16.mxu0 0
    %324 = vmatpush2.bf16.msra.mxu0 0
    %325 = vmatprep.subr.bf16.mxu0 0
    %326 = vmatpush2.bf16.msra.mxu0 0
    %327 = vmatprep.subr.bf16.mxu0 0
    %328 = vmatpush2.bf16.msra.mxu0 0
    %329 = vmatprep.subr.bf16.mxu0 0
    %330 = vmatpush2.bf16.msra.mxu0 0
    %331 = vmatprep.subr.bf16.mxu0 0
    %332 = vmatpush2.bf16.msra.mxu0 0
    %333 = vmatprep.mubr.bf16.mxu0 0
    %334 = vmatmul.mubr.bf16.gmra.mxu0 %v296
    %v335 = vpop.f32.mrf.mxu0
    %v336 = vadd.f32 0.0, %v335
    %v337 = vpop.f32.mrf.mxu0
    %v338 = vpop.f32.mrf.mxu0
    %v339 = vpop.f32.mrf.mxu0
    %340 = vdwg.mxu0
    %341 = vst.msk [vmem:[#allocation2] sm:$0xff] %vm118, %v290
    %342 = vst.msk [vmem:[#allocation2 + $0x8] sm:$0xff] %vm118, %v336
    // Predicated region
    $region10: #{tpu_custom_call.1} parent=1 // pred_check
      _
    $region11: #{tpu_custom_call.1} parent=1 // pred_check_branch
      %344 = sbr.rel (0) target = $region13
    $region12: #{tpu_custom_call.1} parent=1 // pred_region
      %s346 = ssub.s32 256, 256
      %347 = vsyncadd [#allocation3], %s346
      %s348 = sshll.u32 [#allocation2], 4
      %s349 = int_to_ptr.vmem [resolvable:$true] %s348
      %354 = dma.vmem_to_hbm [thread:$0]  %s349, 256, %s2, [#allocation3], 128, 128, 8
    $region13: #{tpu_custom_call.1} parent=1 // pred_fallthru
      _
    // Predicated region
    $region14: #{tpu_custom_call.1} parent=1 // pred_check
      _
    $region15: #{tpu_custom_call.1} parent=1 // pred_check_branch
      %356 = sbr.rel (0) target = $region17
    $region16: #{tpu_custom_call.1} parent=1 // pred_region
      %357 = dma.done [#allocation3], 256
    $region17: #{tpu_custom_call.1} parent=1 // pred_fallthru
      _
    %358 = vsyncpa [#allocation3], 1

</llo_original>
